<compile_context>
chip_gen: v7x
topology: tpu7x:2x2x1
jax: 0.10.0
libtpu: 0.0.40
codegen_flags: <defaults>
</compile_context>

<pallas_src>
import math
from functools import partial

import jax
import jax.numpy as jnp
from jax.experimental import pallas as pl
from jax.experimental.pallas import tpu as pltpu


_LANE = 128
_TILE_BUDGET_BYTES = 4 * 1024 * 1024      # per output tile; x2 buffers = 8 MiB
_SPLIT_THRESHOLD_BYTES = 2 * 1024 * 1024  # force >=2 tiles above this (v7x dual-TC)


def _broadcast_kernel(const_ref, out_ref):
    # const_ref: (1, T) pattern row; out_ref: (tb, T) output tile.
    # Compute is ~0 and fully hidden under the output HBM DMA.
    out_ref[...] = jnp.broadcast_to(const_ref[...], out_ref.shape)


def _sublane_align(dtype) -> int:
    # Packed sublane count: 8 for 4-byte, 16 for 2-byte, 32 for 1-byte dtypes.
    return max(8, 32 // jnp.dtype(dtype).itemsize)


def _pick_row_tile(n_rows, row_bytes, align, total_bytes):
    """Pick a legal row-tile size for a (n_rows, L) output, or None if infeasible."""
    max_rows = _TILE_BUDGET_BYTES // row_bytes
    if max_rows < 1:
        return None
    if n_rows <= max_rows:
        tb = n_rows  # full batch axis in one block (always layout-legal)
        # Multi-MiB output: split into >=2 tiles so both v7x TCs drive writeback.
        if total_bytes > _SPLIT_THRESHOLD_BYTES and n_rows >= 2 * align:
            tb = max(align, ((n_rows // 2) // align) * align)
        return tb
    if max_rows >= align:
        return (max_rows // align) * align
    return None  # rows too fat for this layout -> use feature tiling instead


def _forward_impl(const_param: jax.Array, batch: int) -> jax.Array:
    _, c, h, w = const_param.shape
    flat = c * h * w
    dtype = const_param.dtype
    itemsize = jnp.dtype(dtype).itemsize
    align = _sublane_align(dtype)
    total_bytes = batch * flat * itemsize

    const_flat = const_param.reshape(1, flat)

    # ---- Regime A: lane-dense repacking --------------------------------------
    # View the row-major (batch, C, H, W) output as (R, L) with L = k*flat a
    # multiple of 128 lanes and k | batch.  Every L-length row is then the same
    # k-fold repetition of the constant -> pure broadcast, unmasked stores.
    k = None
    for cand in range(1, batch + 1):
        if batch % cand:
            continue
        L_cand = flat * cand
        if L_cand % _LANE == 0 and L_cand * itemsize <= _TILE_BUDGET_BYTES:
            k = cand
            break

    if k is not None:
        L = flat * k
        R = batch // k
        tb = _pick_row_tile(R, L * itemsize, align, total_bytes)
        if tb is not None:
            pattern = jnp.tile(const_flat, (1, k)) if k > 1 else const_flat
            out2d = pl.pallas_call(
                _broadcast_kernel,
                out_shape=jax.ShapeDtypeStruct((R, L), dtype),
                grid_spec=pltpu.PrefetchScalarGridSpec(
                    num_scalar_prefetch=0,
                    grid=(pl.cdiv(R, tb),),
                    in_specs=[
                        # Constant index_map -> the tiny pattern row is DMA'd once.
                        pl.BlockSpec((1, L), lambda b: (0, 0)),
                    ],
                    out_specs=pl.BlockSpec((tb, L), lambda b: (b, 0)),
                ),
                compiler_params=pltpu.CompilerParams(
                    dimension_semantics=("parallel",),
                ),
            )(pattern)
            return out2d.reshape(batch, c, h, w)

    # ---- Regime B: 2-axis (batch, feature) tiling -----------------------------
    # Generic fallback (flat not lane-packable for this batch, or one row too fat
    # for Regime A).  Feature tile is a multiple of 128 lanes; batch tile is
    # sublane-aligned; each (tb, tf) block stays within the 4 MiB budget.
    row_bytes = flat * itemsize
    if row_bytes * align <= _TILE_BUDGET_BYTES:
        tf = flat  # whole feature dim per block (full-dim -> legal even if <128)
    else:
        tf = ((_TILE_BUDGET_BYTES // (align * itemsize)) // _LANE) * _LANE
        tf = max(_LANE, tf)

    rows_budget = max(1, _TILE_BUDGET_BYTES // (tf * itemsize))
    if batch <= rows_budget:
        tb = batch
        if total_bytes > _SPLIT_THRESHOLD_BYTES and batch >= 2 * align:
            tb = max(align, ((batch // 2) // align) * align)
    else:
        tb = max(1, (rows_budget // align) * align)

    out2d = pl.pallas_call(
        _broadcast_kernel,
        out_shape=jax.ShapeDtypeStruct((batch, flat), dtype),
        grid_spec=pltpu.PrefetchScalarGridSpec(
            num_scalar_prefetch=0,
            grid=(pl.cdiv(batch, tb), pl.cdiv(flat, tf)),
            in_specs=[
                pl.BlockSpec((1, tf), lambda b, f: (0, f)),
            ],
            out_specs=pl.BlockSpec((tb, tf), lambda b, f: (b, f)),
        ),
        compiler_params=pltpu.CompilerParams(
            dimension_semantics=("parallel", "parallel"),
        ),
    )(const_flat)
    return out2d.reshape(batch, c, h, w)


# Differentiable wrapper: only the (static) batch size is carried to bwd; we do
# not save x and do not materialize a zero cotangent for it.
@partial(jax.custom_vjp, nondiff_argnums=(1,))
def _constant_broadcast(const_param: jax.Array, batch: int) -> jax.Array:
    return _forward_impl(const_param, batch)


def _constant_broadcast_fwd(const_param, batch):
    return _forward_impl(const_param, batch), None


def _constant_broadcast_bwd(batch, _residual, g):
    # d(const) = sum of the cotangent over the broadcast (batch) dimension.
    return (jnp.sum(g, axis=0, keepdims=True),)


_constant_broadcast.defvjp(_constant_broadcast_fwd, _constant_broadcast_bwd)


def constant_input_forward(const_param: jax.Array, x: jax.Array) -> jax.Array:
    """ConstantInput.forward: replicate const_param (1,C,H,W) across x.shape[0]."""
    return _constant_broadcast(const_param, x.shape[0])


if __name__ == "__main__":
    # Module config (small, consistent with the PyTorch __init__ defaults).
    n_channels = 4
    size = 4
    batch = 2

    key = jax.random.PRNGKey(0)
    k_param, k_x = jax.random.split(key)

    # "Parameter" init, matching torch.randn(1, n_channels, size, size).
    const_param = jax.random.normal(
        k_param, (1, n_channels, size, size), dtype=jnp.float32
    )

    # Forward only uses input.shape[0]; give it a typical NCHW feature tensor.
    x = jax.random.normal(k_x, (batch, 4, 16, 16), dtype=jnp.float32)

    out = constant_input_forward(const_param, x)
    out = jax.block_until_ready(out)

    # Reference check: out[b] == const_param[0] for every b.
    ref = jnp.broadcast_to(const_param, (batch, n_channels, size, size))
    assert out.shape == (batch, n_channels, size, size)
    assert out.dtype == const_param.dtype
    assert bool(jnp.allclose(out, ref))

    print("KERNEL_OK")
</pallas_src>

<mosaic_0001>
module attributes {stable_mosaic.version = 11 : i64} {
  func.func @_broadcast_kernel(%arg0: i32, %arg1: memref<1x128xf32, #tpu.memory_space<vmem>>, %arg2: memref<1x128xf32, #tpu.memory_space<vmem>>) attributes {dimension_semantics = [#tpu.dimension_semantics<parallel>], iteration_bounds = array<i64: 1>, scalar_prefetch = 0 : i64, scratch_operands = 0 : i64, tpu.core_type = #tpu.core_type<tc>, window_params = [{pipeline_mode = #tpu.pipeline_mode<synchronous>, transform_indices = @transform_0, window_bounds = array<i64: 1, 128>}, {transform_indices = @transform_1, window_bounds = array<i64: 1, 128>}]} {
    %c0 = arith.constant 0 : index
    %c0_0 = arith.constant 0 : index
    %0 = vector.load %arg1[%c0, %c0_0] : memref<1x128xf32, #tpu.memory_space<vmem>>, vector<1x128xf32>
    %c0_1 = arith.constant 0 : index
    %c0_2 = arith.constant 0 : index
    %1 = vector.load %arg2[%c0_1, %c0_2] : memref<1x128xf32, #tpu.memory_space<vmem>>, vector<1x128xf32>
    tpu.vector_store %arg2[%c0_1, %c0_2], %0 {strides = array<i32>} : memref<1x128xf32, #tpu.memory_space<vmem>>, vector<1x128xf32>,
    return
  }
  func.func @transform_0(%arg0: i32) -> (i32, i32) {
    %c0_i32 = arith.constant 0 : i32
    %c0_i32_0 = arith.constant 0 : i32
    %c0_i32_1 = arith.constant 0 : i32
    return %c0_i32, %c0_i32_0 : i32, i32
  }
  func.func @transform_1(%arg0: i32) -> (i32, i32) {
    %c0_i32 = arith.constant 0 : i32
    %c0_i32_0 = arith.constant 0 : i32
    return %arg0, %c0_i32 : i32, i32
  }
}

</mosaic_0001>

<llo_original>
// kernel: tpu_custom_call.1
$region0: #{tpu_custom_call.1}
  #allocation0 [shape = 'u32[]', space=smem, size = 0x4, offset = 0x4, fixed_abs, tag = 'smem constant byte address 0x4 - core index']
  #allocation1 [shape = 'u32[144,128]{1,0:T(1,128)}', space=vmem, size = 0x12000, scoped, tag = 'internal scratch']
  %s0 = inlined_call_operand.hbm [shape: f32[1,128], index: 0, kind: input, shape index: {}]
  %s1 = inlined_call_operand.hbm [shape: f32[1,128], index: 1, kind: output, shape index: {}]
  %s2 = sld [smem:[#allocation0]]
  $region18: #{tpu_custom_call.1} parent=0
    _
  %s4 = ssub.s32 1, %s2
  %s5 = scalar_select 0, %s4, %s2
  $region1: #{tpu_custom_call.1} parent=0
    #allocation2 [shape = 'u8[512]{0}', space=vmem, size = 0x400, scoped, tag = 'input window, operand 0, single buffered']
    #allocation3 [shape = 's32[1]{0}', space=sflag, size = 0x4, scoped, tag = 'scoped memory for tpu_custom_call.1']
    #allocation4 [shape = 's32[1]{0}', space=sflag, size = 0x4, scoped, tag = 'scoped memory for tpu_custom_call.1']
    #allocation5 [shape = 'u8[512]{0}', space=vmem, size = 0x400, scoped, tag = 'output window, operand 0, single buffered']
    %6 = vsyncpa [#allocation3], 0
    %7 = vsyncpa [#allocation4], 0
    // Predicated region
    $region2: #{tpu_custom_call.1} parent=1 // pred_check
      _
    $region3: #{tpu_custom_call.1} parent=1 // pred_check_branch
      %9 = sbr.rel (0) target = $region5
    $region4: #{tpu_custom_call.1} parent=1 // pred_region
      %s11 = ssub.s32 16, 16
      %12 = vsyncadd [#allocation3], %s11
      %s14 = sshll.u32 [#allocation2], 4
      %s15 = int_to_ptr.vmem [resolvable:$true] %s14
      %17 = dma.hbm_to_vmem [thread:$0]  %s0, 16, %s15, [#allocation3]
    $region5: #{tpu_custom_call.1} parent=1 // pred_fallthru
      _
    // Predicated region
    $region6: #{tpu_custom_call.1} parent=1 // pred_check
      _
    $region7: #{tpu_custom_call.1} parent=1 // pred_check_branch
      %19 = sbr.rel (0) target = $region9
    $region8: #{tpu_custom_call.1} parent=1 // pred_region
      %20 = dma.done [#allocation3], 16
    $region9: #{tpu_custom_call.1} parent=1 // pred_fallthru
      _
    %v21 = vld [vmem:[#allocation2] sm:$0x1]
    %22 = vst [vmem:[#allocation5] sm:$0x1] %v21
    // Predicated region
    $region10: #{tpu_custom_call.1} parent=1 // pred_check
      _
    $region11: #{tpu_custom_call.1} parent=1 // pred_check_branch
      %24 = sbr.rel (0) target = $region13
    $region12: #{tpu_custom_call.1} parent=1 // pred_region
      %s26 = ssub.s32 16, 16
      %27 = vsyncadd [#allocation4], %s26
      %s29 = sshll.u32 [#allocation5], 4
      %s30 = int_to_ptr.vmem [resolvable:$true] %s29
      %32 = dma.vmem_to_hbm [thread:$0]  %s30, 16, %s1, [#allocation4]
    $region13: #{tpu_custom_call.1} parent=1 // pred_fallthru
      _
    // Predicated region
    $region14: #{tpu_custom_call.1} parent=1 // pred_check
      _
    $region15: #{tpu_custom_call.1} parent=1 // pred_check_branch
      %34 = sbr.rel (0) target = $region17
    $region16: #{tpu_custom_call.1} parent=1 // pred_region
      %35 = dma.done [#allocation4], 16
    $region17: #{tpu_custom_call.1} parent=1 // pred_fallthru
      _
    %36 = vsyncpa [#allocation3], 1
    %37 = vsyncpa [#allocation4], 1

</llo_original>
